<compile_context>
chip_gen: v5e
topology: v5e:2x2
jax: 0.10.0
libtpu: 0.0.40
codegen_flags: <defaults>
</compile_context>

<pallas_src>
import functools

import jax
import jax.numpy as jnp
from jax.experimental import pallas as pl
from jax.experimental.pallas import tpu as pltpu

LANES = 128
DEFAULT_TILE_R = 512     # 512 sublane-rows x 128 lanes = 64K pixels per grid step
PAD_LOGIT = 100.0        # padded pixels: logits [PAD_LOGIT, 0, ...] + label 0
                         # -> p == 1, logp == 0 -> exactly zero loss (keep finite!)


def _round_up(a, b):
    return (a + b - 1) // b * b


def _focal_kernel(preds_ref, labels_ref, out_ref, *, gamma, alpha_vals,
                  num_classes):
    # preds_ref:  (C, TILE_R, 128)  logits, class on the leading (non-minor) axis
    # labels_ref: (TILE_R, 128)     int32 class indices
    # out_ref:    (1, 8, 128)       lane-dense per-tile partial sum
    x = preds_ref[...].astype(jnp.float32)
    labels = labels_ref[...]

    # max over the small class axis -- pure VPU, no cross-lane work
    m = x[0]
    for c in range(1, num_classes):
        m = jnp.maximum(m, x[c])

    # single pass over classes: sum-exp, gather selected logit, gather alpha
    sum_exp = None
    sel = jnp.zeros_like(m)
    alpha = jnp.zeros_like(m)
    for c in range(num_classes):
        shifted_c = x[c] - m
        e_c = jnp.exp(shifted_c)
        sum_exp = e_c if sum_exp is None else sum_exp + e_c
        is_c = labels == c
        sel = jnp.where(is_c, shifted_c, sel)
        alpha = jnp.where(is_c, jnp.float32(alpha_vals[c]), alpha)

    logp = sel - jnp.log(sum_exp)          # log_softmax gathered at the label
    p = jnp.exp(logp)
    one_minus_p = 1.0 - p

    g = float(gamma)
    if g == int(g) and g >= 0.0:
        # integer gamma: multiply chain on the VPU (avoids exp/log pow on EUP)
        w = jnp.ones_like(one_minus_p)
        for _ in range(int(g)):
            w = w * one_minus_p
    else:
        w = one_minus_p ** g

    loss = -alpha * w * logp               # (TILE_R, 128)

    # reduce sublanes in vreg-aligned 8-row chunks -> (8, 128) partial sum
    tile_r = loss.shape[0]
    partial = loss[0:8]
    for k in range(1, tile_r // 8):
        partial = partial + loss[k * 8:(k + 1) * 8]
    out_ref[0] = partial


def focal_loss(preds, labels, *, alpha=0.25, gamma=2, num_classes=3,
               size_average=True):
    """preds: [B, C, H, W] float logits, labels: [B, H, W] int -> scalar loss."""
    B, C, H, W = preds.shape
    assert C == num_classes
    assert labels.shape == (B, H, W)

    # alpha vector as in the PyTorch __init__ (baked in as static constants)
    if isinstance(alpha, (list, tuple)):
        assert len(alpha) == num_classes
        alpha_vals = tuple(float(a) for a in alpha)
    else:
        assert alpha < 1
        alpha_vals = (float(alpha),) + (1.0 - float(alpha),) * (num_classes - 1)

    n_valid = B * H * W

    # class-on-leading-axis, pixels lane-dense: [C, N] then [C, N/128, 128]
    preds_flat = jnp.transpose(preds, (1, 0, 2, 3)).reshape(C, n_valid)
    labels_flat = labels.reshape(n_valid).astype(jnp.int32)

    nr = (n_valid + LANES - 1) // LANES
    tile_r = min(DEFAULT_TILE_R, _round_up(nr, 8))
    nr_pad = _round_up(nr, tile_r)
    pad_n = nr_pad * LANES - n_valid
    if pad_n:
        # padded pixels contribute exactly zero loss (see PAD_LOGIT note)
        pad_block = jnp.zeros((C, pad_n), preds_flat.dtype)
        pad_block = pad_block.at[0, :].set(
            jnp.asarray(PAD_LOGIT, preds_flat.dtype))
        preds_flat = jnp.concatenate([preds_flat, pad_block], axis=1)
        labels_flat = jnp.concatenate(
            [labels_flat, jnp.zeros((pad_n,), jnp.int32)])

    preds_3d = preds_flat.reshape(C, nr_pad, LANES)
    labels_2d = labels_flat.reshape(nr_pad, LANES)
    num_tiles = nr_pad // tile_r

    kernel = functools.partial(_focal_kernel, gamma=gamma,
                               alpha_vals=alpha_vals, num_classes=num_classes)

    partials = pl.pallas_call(
        kernel,
        out_shape=jax.ShapeDtypeStruct((num_tiles, 8, LANES), jnp.float32),
        grid=(num_tiles,),
        in_specs=[
            pl.BlockSpec((C, tile_r, LANES), lambda i: (0, i, 0)),
            pl.BlockSpec((tile_r, LANES), lambda i: (i, 0)),
        ],
        out_specs=pl.BlockSpec((1, 8, LANES), lambda i: (i, 0, 0)),
        compiler_params=pltpu.CompilerParams(
            dimension_semantics=("parallel",)),
    )(preds_3d, labels_2d)

    total = jnp.sum(partials)
    if size_average:
        return total / jnp.float32(n_valid)
    return total


def _reference(preds, labels, *, alpha=0.25, gamma=2, num_classes=3,
               size_average=True):
    if isinstance(alpha, (list, tuple)):
        alpha_vec = jnp.asarray(alpha, jnp.float32)
    else:
        alpha_vec = jnp.concatenate(
            [jnp.array([alpha], jnp.float32),
             jnp.full((num_classes - 1,), 1.0 - alpha, jnp.float32)])
    B, C, H, W = preds.shape
    p2 = jnp.transpose(preds, (0, 2, 3, 1)).reshape(-1, C).astype(jnp.float32)
    lab = labels.reshape(-1)
    logsoft = jax.nn.log_softmax(p2, axis=1)
    logp = jnp.take_along_axis(logsoft, lab[:, None], axis=1)[:, 0]
    p = jnp.exp(logp)
    a = alpha_vec[lab]
    loss = -a * (1.0 - p) ** gamma * logp
    return jnp.mean(loss) if size_average else jnp.sum(loss)


if __name__ == "__main__":
    key = jax.random.PRNGKey(0)
    k1, k2 = jax.random.split(key)
    B, C, H, W = 2, 3, 16, 16          # num_classes = 3
    preds = jax.random.normal(k1, (B, C, H, W), dtype=jnp.float32)
    labels = jax.random.randint(k2, (B, H, W), 0, C, dtype=jnp.int32)

    loss = focal_loss(preds, labels, alpha=0.25, gamma=2, num_classes=C,
                      size_average=True)
    loss = jax.block_until_ready(loss)

    ref = _reference(preds, labels, alpha=0.25, gamma=2, num_classes=C,
                     size_average=True)
    assert jnp.allclose(loss, ref, rtol=1e-5, atol=1e-6), (loss, ref)
    print("KERNEL_OK")
</pallas_src>

<mosaic_0001>
module attributes {stable_mosaic.version = 11 : i64} {
  func.func @_focal_kernel(%arg0: i32, %arg1: memref<3x8x128xf32, #tpu.memory_space<vmem>>, %arg2: memref<8x128xi32, #tpu.memory_space<vmem>>, %arg3: memref<1x8x128xf32, #tpu.memory_space<vmem>>) attributes {dimension_semantics = [#tpu.dimension_semantics<parallel>], iteration_bounds = array<i64: 1>, scalar_prefetch = 0 : i64, scratch_operands = 0 : i64, tpu.core_type = #tpu.core_type<tc>, window_params = [{transform_indices = @transform_0, window_bounds = array<i64: 3, 8, 128>}, {transform_indices = @transform_1, window_bounds = array<i64: 8, 128>}, {transform_indices = @transform_2, window_bounds = array<i64: 1, 8, 128>}]} {
    %c0 = arith.constant 0 : index
    %c0_0 = arith.constant 0 : index
    %c0_1 = arith.constant 0 : index
    %0 = vector.load %arg1[%c0, %c0_0, %c0_1] : memref<3x8x128xf32, #tpu.memory_space<vmem>>, vector<3x8x128xf32>
    %c0_2 = arith.constant 0 : index
    %c0_3 = arith.constant 0 : index
    %1 = vector.load %arg2[%c0_2, %c0_3] : memref<8x128xi32, #tpu.memory_space<vmem>>, vector<8x128xi32>
    %2 = vector.extract_strided_slice %0 {offsets = [0, 0, 0], sizes = [1, 8, 128], strides = [1, 1, 1]} : vector<3x8x128xf32> to vector<1x8x128xf32>
    %3 = vector.shape_cast %2 : vector<1x8x128xf32> to vector<8x128xf32>
    %4 = vector.extract_strided_slice %0 {offsets = [1, 0, 0], sizes = [1, 8, 128], strides = [1, 1, 1]} : vector<3x8x128xf32> to vector<1x8x128xf32>
    %5 = vector.shape_cast %4 : vector<1x8x128xf32> to vector<8x128xf32>
    %6 = arith.maximumf %3, %5 : vector<8x128xf32>
    %7 = vector.extract_strided_slice %0 {offsets = [2, 0, 0], sizes = [1, 8, 128], strides = [1, 1, 1]} : vector<3x8x128xf32> to vector<1x8x128xf32>
    %8 = vector.shape_cast %7 : vector<1x8x128xf32> to vector<8x128xf32>
    %9 = arith.maximumf %6, %8 : vector<8x128xf32>
    %cst = arith.constant 0.000000e+00 : f32
    %10 = vector.broadcast %cst : f32 to vector<8x128xf32>
    %cst_4 = arith.constant 0.000000e+00 : f32
    %11 = vector.broadcast %cst_4 : f32 to vector<8x128xf32>
    %12 = vector.extract_strided_slice %0 {offsets = [0, 0, 0], sizes = [1, 8, 128], strides = [1, 1, 1]} : vector<3x8x128xf32> to vector<1x8x128xf32>
    %13 = vector.shape_cast %12 : vector<1x8x128xf32> to vector<8x128xf32>
    %14 = arith.subf %13, %9 : vector<8x128xf32>
    %15 = math.exp %14 : vector<8x128xf32>
    %c0_i32 = arith.constant 0 : i32
    %16 = vector.broadcast %c0_i32 : i32 to vector<8x128xi32>
    %17 = arith.cmpi eq, %1, %16 : vector<8x128xi32>
    %18 = arith.select %17, %14, %10 : vector<8x128xi1>, vector<8x128xf32>
    %cst_5 = arith.constant 2.500000e-01 : f32
    %19 = vector.broadcast %cst_5 : f32 to vector<8x128xf32>
    %20 = arith.select %17, %19, %11 : vector<8x128xi1>, vector<8x128xf32>
    %21 = vector.extract_strided_slice %0 {offsets = [1, 0, 0], sizes = [1, 8, 128], strides = [1, 1, 1]} : vector<3x8x128xf32> to vector<1x8x128xf32>
    %22 = vector.shape_cast %21 : vector<1x8x128xf32> to vector<8x128xf32>
    %23 = arith.subf %22, %9 : vector<8x128xf32>
    %24 = math.exp %23 : vector<8x128xf32>
    %25 = arith.addf %15, %24 : vector<8x128xf32>
    %c1_i32 = arith.constant 1 : i32
    %26 = vector.broadcast %c1_i32 : i32 to vector<8x128xi32>
    %27 = arith.cmpi eq, %1, %26 : vector<8x128xi32>
    %28 = arith.select %27, %23, %18 : vector<8x128xi1>, vector<8x128xf32>
    %cst_6 = arith.constant 7.500000e-01 : f32
    %29 = vector.broadcast %cst_6 : f32 to vector<8x128xf32>
    %30 = arith.select %27, %29, %20 : vector<8x128xi1>, vector<8x128xf32>
    %31 = vector.extract_strided_slice %0 {offsets = [2, 0, 0], sizes = [1, 8, 128], strides = [1, 1, 1]} : vector<3x8x128xf32> to vector<1x8x128xf32>
    %32 = vector.shape_cast %31 : vector<1x8x128xf32> to vector<8x128xf32>
    %33 = arith.subf %32, %9 : vector<8x128xf32>
    %34 = math.exp %33 : vector<8x128xf32>
    %35 = arith.addf %25, %34 : vector<8x128xf32>
    %c2_i32 = arith.constant 2 : i32
    %36 = vector.broadcast %c2_i32 : i32 to vector<8x128xi32>
    %37 = arith.cmpi eq, %1, %36 : vector<8x128xi32>
    %38 = arith.select %37, %33, %28 : vector<8x128xi1>, vector<8x128xf32>
    %cst_7 = arith.constant 7.500000e-01 : f32
    %39 = vector.broadcast %cst_7 : f32 to vector<8x128xf32>
    %40 = arith.select %37, %39, %30 : vector<8x128xi1>, vector<8x128xf32>
    %41 = math.log %35 : vector<8x128xf32>
    %42 = arith.subf %38, %41 : vector<8x128xf32>
    %43 = math.exp %42 : vector<8x128xf32>
    %cst_8 = arith.constant 1.000000e+00 : f32
    %44 = vector.broadcast %cst_8 : f32 to vector<8x128xf32>
    %45 = arith.subf %44, %43 : vector<8x128xf32>
    %cst_9 = arith.constant 1.000000e+00 : f32
    %46 = vector.broadcast %cst_9 : f32 to vector<8x128xf32>
    %47 = arith.mulf %46, %45 : vector<8x128xf32>
    %48 = arith.mulf %47, %45 : vector<8x128xf32>
    %cst_10 = arith.constant 0.000000e+00 : f32
    %49 = vector.broadcast %cst_10 : f32 to vector<8x128xf32>
    %50 = arith.subf %49, %40 : vector<8x128xf32>
    %51 = arith.mulf %50, %48 : vector<8x128xf32>
    %52 = arith.mulf %51, %42 : vector<8x128xf32>
    %c0_11 = arith.constant 0 : index
    %c0_12 = arith.constant 0 : index
    %c0_13 = arith.constant 0 : index
    %53 = vector.load %arg3[%c0_11, %c0_12, %c0_13] : memref<1x8x128xf32, #tpu.memory_space<vmem>>, vector<1x8x128xf32>
    %54 = vector.shape_cast %53 : vector<1x8x128xf32> to vector<8x128xf32>
    %55 = vector.shape_cast %52 : vector<8x128xf32> to vector<1x8x128xf32>
    tpu.vector_store %arg3[%c0_11, %c0_12, %c0_13], %55 {strides = array<i32>} : memref<1x8x128xf32, #tpu.memory_space<vmem>>, vector<1x8x128xf32>,
    return
  }
  func.func @transform_0(%arg0: i32) -> (i32, i32, i32) {
    %c0_i32 = arith.constant 0 : i32
    %c0_i32_0 = arith.constant 0 : i32
    %c0_i32_1 = arith.constant 0 : i32
    return %c0_i32, %arg0, %c0_i32_0 : i32, i32, i32
  }
  func.func @transform_1(%arg0: i32) -> (i32, i32) {
    %c0_i32 = arith.constant 0 : i32
    %c0_i32_0 = arith.constant 0 : i32
    return %arg0, %c0_i32 : i32, i32
  }
  func.func @transform_2(%arg0: i32) -> (i32, i32, i32) {
    %c0_i32 = arith.constant 0 : i32
    %c0_i32_0 = arith.constant 0 : i32
    %c0_i32_1 = arith.constant 0 : i32
    return %arg0, %c0_i32, %c0_i32_0 : i32, i32, i32
  }
}

</mosaic_0001>

<llo_original>
// kernel: tpu_custom_call.1
$region0: #{tpu_custom_call.1}
  #allocation0 [shape = 'u32[]', space=smem, size = 0x4, offset = 0x4, fixed_abs, tag = 'smem constant byte address 0x4 - core index']
  #allocation1 [shape = 'u32[72,128]{1,0:T(1,128)}', space=vmem, size = 0x9000, scoped, tag = 'internal scratch']
  %s0 = inlined_call_operand.hbm [shape: f32[3,8,128], index: 0, kind: input, shape index: {}]
  %s1 = inlined_call_operand.hbm [shape: s32[8,128], index: 1, kind: input, shape index: {}]
  %s2 = inlined_call_operand.hbm [shape: f32[1,8,128], index: 2, kind: output, shape index: {}]
  %s3 = sld [smem:[#allocation0]]
  $region26: #{tpu_custom_call.1} parent=0
    _
  %s5 = ssub.s32 1, %s3
  %s6 = scalar_select 0, %s5, %s3
  $region1: #{tpu_custom_call.1} parent=0
    #allocation2 [shape = 'u8[12288]{0}', space=vmem, size = 0x3000, scoped, tag = 'input window, operand 0, single buffered']
    #allocation3 [shape = 's32[1]{0}', space=sflag, size = 0x4, scoped, tag = 'scoped memory for tpu_custom_call.1']
    #allocation4 [shape = 's32[1]{0}', space=sflag, size = 0x4, scoped, tag = 'scoped memory for tpu_custom_call.1']
    #allocation5 [shape = 'u8[4096]{0}', space=vmem, size = 0x1000, scoped, tag = 'input window, operand 1, single buffered']
    #allocation6 [shape = 's32[1]{0}', space=sflag, size = 0x4, scoped, tag = 'scoped memory for tpu_custom_call.1']
    #allocation7 [shape = 'u8[4096]{0}', space=vmem, size = 0x1000, scoped, tag = 'output window, operand 0, single buffered']
    %7 = vsyncpa [#allocation3], 0
    %8 = vsyncpa [#allocation6], 0
    %9 = vsyncpa [#allocation4], 0
    // Predicated region
    $region2: #{tpu_custom_call.1} parent=1 // pred_check
      _
    $region3: #{tpu_custom_call.1} parent=1 // pred_check_branch
      %11 = sbr.rel (0) target = $region5
    $region4: #{tpu_custom_call.1} parent=1 // pred_region
      %13 = vsyncadd [#allocation3], 0
      %s14 = sshll.u32 %s0, 4
      %s15 = int_to_ptr.hbm [resolvable:$true] %s14
      %s16 = sshll.u32 [#allocation2], 4
      %s17 = int_to_ptr.vmem [resolvable:$true] %s16
      %22 = dma.hbm_to_vmem [thread:$0]  %s15, 384, %s17, [#allocation3], 128, 128, 8
    $region5: #{tpu_custom_call.1} parent=1 // pred_fallthru
      _
    // Predicated region
    $region6: #{tpu_custom_call.1} parent=1 // pred_check
      _
    $region7: #{tpu_custom_call.1} parent=1 // pred_check_branch
      %24 = sbr.rel (0) target = $region9
    $region8: #{tpu_custom_call.1} parent=1 // pred_region
      %26 = vsyncadd [#allocation6], 0
      %s28 = sshll.u32 %s1, 4
      %s29 = int_to_ptr.hbm [resolvable:$true] %s28
      %s30 = sshll.u32 [#allocation5], 4
      %s31 = int_to_ptr.vmem [resolvable:$true] %s30
      %33 = dma.hbm_to_vmem [thread:$0]  %s29, 128, %s31, [#allocation6]
    $region9: #{tpu_custom_call.1} parent=1 // pred_fallthru
      _
    // Predicated region
    $region10: #{tpu_custom_call.1} parent=1 // pred_check
      _
    $region11: #{tpu_custom_call.1} parent=1 // pred_check_branch
      %35 = sbr.rel (0) target = $region13
    $region12: #{tpu_custom_call.1} parent=1 // pred_region
      %37 = dma.done [#allocation3], 384
    $region13: #{tpu_custom_call.1} parent=1 // pred_fallthru
      _
    // Predicated region
    $region14: #{tpu_custom_call.1} parent=1 // pred_check
      _
    $region15: #{tpu_custom_call.1} parent=1 // pred_check_branch
      %39 = sbr.rel (0) target = $region17
    $region16: #{tpu_custom_call.1} parent=1 // pred_region
      %41 = dma.done [#allocation6], 128
    $region17: #{tpu_custom_call.1} parent=1 // pred_fallthru
      _
    %v42 = vld [vmem:[#allocation2] sm:$0xff]
    %v43 = vld [vmem:[#allocation2 + $0x8] sm:$0xff]
    %v44 = vld [vmem:[#allocation2 + $0x10] sm:$0xff]
    %v45 = vld [vmem:[#allocation5] sm:$0xff]
    %v46 = vmax.f32 %v42, %v43
    %v47 = vmax.f32 %v46, %v44
    %v48 = vsub.f32 %v42, %v47
    %v49 = vmul.f32 %v48, 1.442695
    %v50 = vpow.pop %v49
    %vm51 = vcmp.eq.s32.totalorder %v45, 0
    %v52 = vsel %vm51, %v48, 0.0
    %v53 = vsel %vm51, 0.25, 0.0
    %v54 = vsub.f32 %v43, %v47
    %v55 = vmul.f32 %v54, 1.442695
    %v56 = vpow.pop %v55
    %v57 = vadd.f32 %v50, %v56
    %vm58 = vcmp.eq.s32.totalorder %v45, 1
    %v59 = vsel %vm58, %v54, %v52
    %v60 = vsel %vm58, 0.75, %v53
    %v61 = vsub.f32 %v44, %v47
    %v62 = vmul.f32 %v61, 1.442695
    %v63 = vpow.pop %v62
    %v64 = vadd.f32 %v57, %v63
    %vm65 = vcmp.eq.s32.totalorder %v45, 2
    %v66 = vsel %vm65, %v61, %v59
    %v67 = vsel %vm65, 0.75, %v60
    %v68 = vlog2.pop %v64
    %v69 = vmul.f32 %v68, 0.6931472
    %v70 = vsub.f32 %v66, %v69
    %v71 = vmul.f32 %v70, 1.442695
    %v72 = vpow.pop %v71
    %v73 = vsub.f32 1.0, %v72
    %v74 = vmul.f32 %v73, %v73
    %v75 = vsub.f32 0.0, %v67
    %v76 = vmul.f32 %v75, %v74
    %v77 = vmul.f32 %v76, %v70
    %78 = vst [vmem:[#allocation7] sm:$0xff] %v77
    // Predicated region
    $region18: #{tpu_custom_call.1} parent=1 // pred_check
      _
    $region19: #{tpu_custom_call.1} parent=1 // pred_check_branch
      %80 = sbr.rel (0) target = $region21
    $region20: #{tpu_custom_call.1} parent=1 // pred_region
      %82 = vsyncadd [#allocation4], 0
      %s84 = sshll.u32 [#allocation7], 4
      %s85 = int_to_ptr.vmem [resolvable:$true] %s84
      %s86 = sshll.u32 %s2, 4
      %s87 = int_to_ptr.hbm [resolvable:$true] %s86
      %89 = dma.vmem_to_hbm [thread:$0]  %s85, 128, %s87, [#allocation4]
    $region21: #{tpu_custom_call.1} parent=1 // pred_fallthru
      _
    // Predicated region
    $region22: #{tpu_custom_call.1} parent=1 // pred_check
      _
    $region23: #{tpu_custom_call.1} parent=1 // pred_check_branch
      %91 = sbr.rel (0) target = $region25
    $region24: #{tpu_custom_call.1} parent=1 // pred_region
      %93 = dma.done [#allocation4], 128
    $region25: #{tpu_custom_call.1} parent=1 // pred_fallthru
      _
    %94 = vsyncpa [#allocation3], 1
    %95 = vsyncpa [#allocation6], 1
    %96 = vsyncpa [#allocation4], 1

</llo_original>
